<compile_context>
chip_gen: v7x
topology: tpu7x:2x2x1
jax: 0.10.0
libtpu: 0.0.40
codegen_flags: <defaults>
</compile_context>

<pallas_src>
import math

import jax
import jax.numpy as jnp
from jax.experimental import pallas as pl
from jax.experimental.pallas import tpu as pltpu


# ----------------------------- Pallas kernel ---------------------------------
def isic_kernel(x_ref, wc_ref, shift_ref, wl_ref, bl_ref, out_ref):
    # x_ref    : (TB, 5, 5, 64)  bf16  NHWC feature-map tile (whole images)
    # wc_ref   : (256, 64)       bf16  im2col conv weight, row = (dh*2+dw)*64 + cin, BN folded
    # shift_ref: (1, 64)         f32   folded conv-bias + BN shift
    # wl_ref   : (64, 128)       bf16  linear weight, zero-padded to 128 output lanes
    # bl_ref   : (1, 128)        f32   linear bias, zero-padded
    # out_ref  : (TB, 128)       bf16
    tb, h, w, cin = x_ref.shape
    cout = wc_ref.shape[1]
    ho, wo = h - 1, w - 1            # valid conv with k=2 -> 4, 4
    npos = ho * wo                   # 16 spatial positions per image

    x = x_ref[...]                   # load the DMA'd tile once (bf16)

    # im2col built ONCE: lane-concat the 4 shifted slices -> (TB*16, 256), then a single
    # lane-dense K=256 matmul (full MXU depth on v6e/v7x), f32 accumulation.
    xi = jnp.concatenate(
        [x[:, dh:dh + ho, dw:dw + wo, :].reshape(tb * npos, cin)
         for dh in range(2) for dw in range(2)],
        axis=-1)                                                      # (TB*16, 256) bf16
    conv = jnp.dot(xi, wc_ref[...], preferred_element_type=jnp.float32)   # (TB*16, 64) f32

    # Folded conv bias + BatchNorm (eval mode) + ReLU.
    act = jnp.maximum(conv + shift_ref[...], 0.0)

    # AvgPool2d(4) over the 4x4 map == mean over the 16 spatial rows; flatten -> (TB, 64).
    pooled = jnp.mean(act.reshape(tb, npos, cout), axis=1)

    # Linear(64, 3) padded to 128 lanes: bf16 operands, f32 accumulate, bf16 lane-dense store.
    logits = jnp.dot(pooled.astype(jnp.bfloat16), wl_ref[...],
                     preferred_element_type=jnp.float32) + bl_ref[...]
    out_ref[...] = logits.astype(out_ref.dtype)


# ------------------------------- wrappers --------------------------------------
def isicnet_forward_nhwc(x_nhwc, params, *, block_b=256):
    """Fast path.  x_nhwc: (B, 5, 5, 64) NHWC feature map (bf16 preferred — the layout/dtype
    the `features` backbone should emit).  Returns (B, 3) float32 logits."""
    B, H, W, Cin = x_nhwc.shape
    kh = kw = 2
    assert (H, W, Cin) == (5, 5, 64), "classifier C1 expects a (B, 5, 5, 64) feature map"
    assert block_b % 8 == 0

    x_bf = x_nhwc.astype(jnp.bfloat16)     # no-op (or fused into the producer) if already bf16

    Cout = params["conv_w"].shape[0]
    nout = params["lin_w"].shape[0]
    eps = 1e-5

    # Fold BatchNorm (eval mode, running stats) + conv bias:
    #   y = conv_nobias(x) * scale + shift,  scale = gamma/sqrt(var+eps),
    #   shift = (conv_b - mean)*scale + beta.
    bn_scale = params["bn_gamma"] * jax.lax.rsqrt(params["bn_var"] + eps)      # (64,)
    shift = ((params["conv_b"] - params["bn_mean"]) * bn_scale
             + params["bn_beta"]).reshape(1, Cout).astype(jnp.float32)         # (1, 64)
    wc = params["conv_w"] * bn_scale[:, None, None, None]                      # (Cout,Cin,kh,kw)
    wc = jnp.transpose(wc, (2, 3, 1, 0)).reshape(kh * kw * Cin, Cout)          # row=(dh*2+dw)*64+cin
    wc = wc.astype(jnp.bfloat16)                                               # (256, 64)

    # Linear(64, 3) zero-padded to 128 output lanes (lane-dense unmasked writeback).
    OUTP = 128
    wl = jnp.zeros((Cout, OUTP), jnp.bfloat16).at[:, :nout].set(
        params["lin_w"].T.astype(jnp.bfloat16))
    bl = jnp.zeros((1, OUTP), jnp.float32).at[:, :nout].set(params["lin_b"])

    # Batch tile: whole images per tile; multiple of 8 whenever the grid has > 1 step.
    if B > block_b:
        TB = block_b
    elif B >= 16:
        TB = ((B + 1) // 2 + 7) // 8 * 8   # >= 2 grid steps so both v7x TensorCores get work
    else:
        TB = B
    grid = (pl.cdiv(B, TB),)

    out = pl.pallas_call(
        isic_kernel,
        out_shape=jax.ShapeDtypeStruct((B, OUTP), jnp.bfloat16),
        grid=grid,
        in_specs=[
            pl.BlockSpec((TB, H, W, Cin), lambda i: (i, 0, 0, 0)),
            pl.BlockSpec((kh * kw * Cin, Cout), lambda i: (0, 0)),
            pl.BlockSpec((1, Cout), lambda i: (0, 0)),
            pl.BlockSpec((Cout, OUTP), lambda i: (0, 0)),
            pl.BlockSpec((1, OUTP), lambda i: (0, 0)),
        ],
        out_specs=pl.BlockSpec((TB, OUTP), lambda i: (i, 0)),
        compiler_params=pltpu.CompilerParams(
            dimension_semantics=("parallel",)),
    )(x_bf, wc, shift, wl, bl)

    return out[:, :nout].astype(jnp.float32)


def isicnet_forward(x, params, *, block_b=256):
    """Module-compatible path.  x: (B, 64, 5, 5) float32 NCHW (output of the external
    `features` backbone).  Returns (B, 3) float32 logits.

    NOTE: the NCHW->NHWC transpose + bf16 cast below is a separate HBM pass (~3x the fused
    kernel's own input traffic).  For best performance, have `features` emit NHWC bf16 and
    call isicnet_forward_nhwc directly."""
    # `features` is supplied externally in the original module; identity here.
    # TODO(synk): plug in a real `features` backbone (emitting NHWC bf16) if one is specified.
    B, Cin, H, W = x.shape
    assert (Cin, H, W) == (64, 5, 5), "classifier C1 expects a (B, 64, 5, 5) feature map"
    x_nhwc = jnp.transpose(x, (0, 2, 3, 1))                  # (B, 5, 5, 64)
    return isicnet_forward_nhwc(x_nhwc, params, block_b=block_b)


# --------------------------- pure-JAX reference --------------------------------
def isicnet_reference(x_nchw, params):
    """f32 reference of ISICNet.forward (features=identity), for validation."""
    eps = 1e-5
    y = jax.lax.conv_general_dilated(
        x_nchw, params["conv_w"], window_strides=(1, 1), padding="VALID",
        dimension_numbers=("NCHW", "OIHW", "NCHW"))
    y = y + params["conv_b"][None, :, None, None]
    scale = params["bn_gamma"] / jnp.sqrt(params["bn_var"] + eps)
    y = (y - params["bn_mean"][None, :, None, None]) * scale[None, :, None, None] \
        + params["bn_beta"][None, :, None, None]
    y = jnp.maximum(y, 0.0)
    y = jnp.mean(y, axis=(2, 3))                 # AvgPool2d(4) on the 4x4 map, then flatten
    return y @ params["lin_w"].T + params["lin_b"]


# --------------------------- parameter init -----------------------------------
def init_params(key):
    k_conv, k_lin = jax.random.split(key, 2)
    Cout, Cin, kh, kw = 64, 64, 2, 2
    n = kh * kw * Cout
    conv_w = jax.random.normal(k_conv, (Cout, Cin, kh, kw), jnp.float32) * math.sqrt(2.0 / n)
    conv_b = jnp.zeros((Cout,), jnp.float32)
    bn_gamma = jnp.ones((Cout,), jnp.float32)
    bn_beta = jnp.zeros((Cout,), jnp.float32)
    bn_mean = jnp.zeros((Cout,), jnp.float32)
    bn_var = jnp.ones((Cout,), jnp.float32)
    lin_w = jax.random.normal(k_lin, (3, 64), jnp.float32) * 0.01   # PyTorch Linear (out, in)
    lin_b = jnp.zeros((3,), jnp.float32)
    return dict(conv_w=conv_w, conv_b=conv_b,
                bn_gamma=bn_gamma, bn_beta=bn_beta, bn_mean=bn_mean, bn_var=bn_var,
                lin_w=lin_w, lin_b=lin_b)


if __name__ == "__main__":
    key = jax.random.PRNGKey(0)
    k_x, k_p = jax.random.split(key)
    params = init_params(k_p)

    # `features` is identity here; classifier C1 requires a (B, 64, 5, 5) feature map
    # (k=2 valid conv -> 4x4, avgpool 4 -> 64 features -> Linear(64, 3)).
    x = jax.random.normal(k_x, (2, 64, 5, 5), jnp.float32)

    fwd = jax.jit(isicnet_forward)
    out = jax.block_until_ready(fwd(x, params))
    assert out.shape == (2, 3) and out.dtype == jnp.float32

    ref = isicnet_reference(x, params)
    assert jnp.allclose(out, ref, atol=1e-2, rtol=1e-2), (out, ref)
    print("KERNEL_OK")
</pallas_src>

<mosaic_0001>
module attributes {stable_mosaic.version = 11 : i64} {
  func.func @isic_kernel(%arg0: i32, %arg1: memref<2x5x5x64xbf16, #tpu.memory_space<vmem>>, %arg2: memref<256x64xbf16, #tpu.memory_space<vmem>>, %arg3: memref<1x64xf32, #tpu.memory_space<vmem>>, %arg4: memref<64x128xbf16, #tpu.memory_space<vmem>>, %arg5: memref<1x128xf32, #tpu.memory_space<vmem>>, %arg6: memref<2x128xbf16, #tpu.memory_space<vmem>>) attributes {dimension_semantics = [#tpu.dimension_semantics<parallel>], iteration_bounds = array<i64: 1>, scalar_prefetch = 0 : i64, scratch_operands = 0 : i64, tpu.core_type = #tpu.core_type<tc>, window_params = [{transform_indices = @transform_0, window_bounds = array<i64: 2, 5, 5, 64>}, {pipeline_mode = #tpu.pipeline_mode<synchronous>, transform_indices = @transform_1, window_bounds = array<i64: 256, 64>}, {pipeline_mode = #tpu.pipeline_mode<synchronous>, transform_indices = @transform_2, window_bounds = array<i64: 1, 64>}, {pipeline_mode = #tpu.pipeline_mode<synchronous>, transform_indices = @transform_3, window_bounds = array<i64: 64, 128>}, {pipeline_mode = #tpu.pipeline_mode<synchronous>, transform_indices = @transform_4, window_bounds = array<i64: 1, 128>}, {transform_indices = @transform_5, window_bounds = array<i64: 2, 128>}]} {
    %c0 = arith.constant 0 : index
    %c0_0 = arith.constant 0 : index
    %c0_1 = arith.constant 0 : index
    %c0_2 = arith.constant 0 : index
    %0 = vector.load %arg1[%c0, %c0_0, %c0_1, %c0_2] : memref<2x5x5x64xbf16, #tpu.memory_space<vmem>>, vector<2x5x5x64xbf16>
    %1 = vector.extract_strided_slice %0 {offsets = [0, 0, 0, 0], sizes = [2, 4, 4, 64], strides = [1, 1, 1, 1]} : vector<2x5x5x64xbf16> to vector<2x4x4x64xbf16>
    %2 = vector.shape_cast %1 : vector<2x4x4x64xbf16> to vector<32x64xbf16>
    %3 = vector.extract_strided_slice %0 {offsets = [0, 0, 1, 0], sizes = [2, 4, 4, 64], strides = [1, 1, 1, 1]} : vector<2x5x5x64xbf16> to vector<2x4x4x64xbf16>
    %4 = vector.shape_cast %3 : vector<2x4x4x64xbf16> to vector<32x64xbf16>
    %5 = vector.extract_strided_slice %0 {offsets = [0, 1, 0, 0], sizes = [2, 4, 4, 64], strides = [1, 1, 1, 1]} : vector<2x5x5x64xbf16> to vector<2x4x4x64xbf16>
    %6 = vector.shape_cast %5 : vector<2x4x4x64xbf16> to vector<32x64xbf16>
    %7 = vector.extract_strided_slice %0 {offsets = [0, 1, 1, 0], sizes = [2, 4, 4, 64], strides = [1, 1, 1, 1]} : vector<2x5x5x64xbf16> to vector<2x4x4x64xbf16>
    %8 = vector.shape_cast %7 : vector<2x4x4x64xbf16> to vector<32x64xbf16>
    %9 = tpu.concatenate %2, %4, %6, %8 in 1 : vector<32x64xbf16>, vector<32x64xbf16>, vector<32x64xbf16>, vector<32x64xbf16> -> vector<32x256xbf16>
    %c0_3 = arith.constant 0 : index
    %c0_4 = arith.constant 0 : index
    %10 = vector.load %arg2[%c0_3, %c0_4] : memref<256x64xbf16, #tpu.memory_space<vmem>>, vector<256x64xbf16>
    %cst = arith.constant dense<0.000000e+00> : vector<32x64xf32>
    %11 = tpu.matmul %9, %10, %cst {dimension_numbers = #tpu.dot_dimension_numbers<[1], [0], [0], [1], [0, 0, 1, 1], [], []>} : vector<32x256xbf16>, vector<256x64xbf16>, vector<32x64xf32> -> vector<32x64xf32>
    %c0_5 = arith.constant 0 : index
    %c0_6 = arith.constant 0 : index
    %12 = vector.load %arg3[%c0_5, %c0_6] : memref<1x64xf32, #tpu.memory_space<vmem>>, vector<1x64xf32>
    %13 = vector.broadcast %12 : vector<1x64xf32> to vector<32x64xf32>
    %14 = arith.addf %11, %13 : vector<32x64xf32>
    %cst_7 = arith.constant 0.000000e+00 : f32
    %15 = vector.broadcast %cst_7 : f32 to vector<32x64xf32>
    %16 = arith.maximumf %14, %15 : vector<32x64xf32>
    %17 = vector.shape_cast %16 : vector<32x64xf32> to vector<2x16x64xf32>
    %cst_8 = arith.constant dense<0.000000e+00> : vector<2x64xf32>
    %18 = vector.multi_reduction <add>, %17, %cst_8 [1] : vector<2x16x64xf32> to vector<2x64xf32>
    %cst_9 = arith.constant 1.600000e+01 : f32
    %19 = vector.broadcast %cst_9 : f32 to vector<2x64xf32>
    %20 = arith.divf %18, %19 : vector<2x64xf32>
    %21 = arith.truncf %20 : vector<2x64xf32> to vector<2x64xbf16>
    %c0_10 = arith.constant 0 : index
    %c0_11 = arith.constant 0 : index
    %22 = vector.load %arg4[%c0_10, %c0_11] : memref<64x128xbf16, #tpu.memory_space<vmem>>, vector<64x128xbf16>
    %cst_12 = arith.constant dense<0.000000e+00> : vector<2x128xf32>
    %23 = tpu.matmul %21, %22, %cst_12 {dimension_numbers = #tpu.dot_dimension_numbers<[1], [0], [0], [1], [0, 0, 1, 1], [], []>} : vector<2x64xbf16>, vector<64x128xbf16>, vector<2x128xf32> -> vector<2x128xf32>
    %c0_13 = arith.constant 0 : index
    %c0_14 = arith.constant 0 : index
    %24 = vector.load %arg5[%c0_13, %c0_14] : memref<1x128xf32, #tpu.memory_space<vmem>>, vector<1x128xf32>
    %25 = vector.broadcast %24 : vector<1x128xf32> to vector<2x128xf32>
    %26 = arith.addf %23, %25 : vector<2x128xf32>
    %27 = arith.truncf %26 : vector<2x128xf32> to vector<2x128xbf16>
    %c0_15 = arith.constant 0 : index
    %c0_16 = arith.constant 0 : index
    %28 = vector.load %arg6[%c0_15, %c0_16] : memref<2x128xbf16, #tpu.memory_space<vmem>>, vector<2x128xbf16>
    tpu.vector_store %arg6[%c0_15, %c0_16], %27 {strides = array<i32>} : memref<2x128xbf16, #tpu.memory_space<vmem>>, vector<2x128xbf16>,
    return
  }
  func.func @transform_0(%arg0: i32) -> (i32, i32, i32, i32) {
    %c0_i32 = arith.constant 0 : i32
    %c0_i32_0 = arith.constant 0 : i32
    %c0_i32_1 = arith.constant 0 : i32
    %c0_i32_2 = arith.constant 0 : i32
    return %arg0, %c0_i32, %c0_i32_0, %c0_i32_1 : i32, i32, i32, i32
  }
  func.func @transform_1(%arg0: i32) -> (i32, i32) {
    %c0_i32 = arith.constant 0 : i32
    %c0_i32_0 = arith.constant 0 : i32
    %c0_i32_1 = arith.constant 0 : i32
    return %c0_i32, %c0_i32_0 : i32, i32
  }
  func.func @transform_2(%arg0: i32) -> (i32, i32) {
    %c0_i32 = arith.constant 0 : i32
    %c0_i32_0 = arith.constant 0 : i32
    %c0_i32_1 = arith.constant 0 : i32
    return %c0_i32, %c0_i32_0 : i32, i32
  }
  func.func @transform_3(%arg0: i32) -> (i32, i32) {
    %c0_i32 = arith.constant 0 : i32
    %c0_i32_0 = arith.constant 0 : i32
    %c0_i32_1 = arith.constant 0 : i32
    return %c0_i32, %c0_i32_0 : i32, i32
  }
  func.func @transform_4(%arg0: i32) -> (i32, i32) {
    %c0_i32 = arith.constant 0 : i32
    %c0_i32_0 = arith.constant 0 : i32
    %c0_i32_1 = arith.constant 0 : i32
    return %c0_i32, %c0_i32_0 : i32, i32
  }
  func.func @transform_5(%arg0: i32) -> (i32, i32) {
    %c0_i32 = arith.constant 0 : i32
    %c0_i32_0 = arith.constant 0 : i32
    return %arg0, %c0_i32 : i32, i32
  }
}

</mosaic_0001>

<llo_original>
// kernel: isicnet_forward.1
$region0: #{isicnet_forward.1}
  #allocation0 [shape = 'u32[]', space=smem, size = 0x4, offset = 0x4, fixed_abs, tag = 'smem constant byte address 0x4 - core index']
  #allocation1 [shape = 'u32[144,128]{1,0:T(1,128)}', space=vmem, size = 0x12000, scoped, tag = 'internal scratch']
  %s0 = inlined_call_operand.vmem [shape: bf16[2,5,5,64], index: 0, kind: input, shape index: {}]
  %s1 = inlined_call_operand.vmem [shape: bf16[256,64], index: 1, kind: input, shape index: {}]
  %s2 = inlined_call_operand.vmem [shape: f32[1,64], index: 2, kind: input, shape index: {}]
  %s3 = inlined_call_operand.vmem [shape: bf16[64,128], index: 3, kind: input, shape index: {}]
  %s4 = inlined_call_operand.vmem [shape: f32[1,128], index: 4, kind: input, shape index: {}]
  %s5 = inlined_call_operand.vmem [shape: bf16[2,128], index: 5, kind: output, shape index: {}]
  %s6 = sld [smem:[#allocation0]]
  $region30: #{isicnet_forward.1} parent=0
    _
  %s8 = ssub.s32 1, %s6
  %s9 = scalar_select 0, %s8, %s6
  // Predicated region
  $region2: #{isicnet_forward.1} parent=0 // pred_check
    _
  $region3: #{isicnet_forward.1} parent=0 // pred_check_branch
    %11 = sbr.rel (0) target = $region5
  $region4: #{isicnet_forward.1} parent=0 // pred_region
    _
  $region5: #{isicnet_forward.1} parent=0 // pred_fallthru
    _
  // Predicated region
  $region6: #{isicnet_forward.1} parent=0 // pred_check
    _
  $region7: #{isicnet_forward.1} parent=0 // pred_check_branch
    %13 = sbr.rel (0) target = $region9
  $region8: #{isicnet_forward.1} parent=0 // pred_region
    _
  $region9: #{isicnet_forward.1} parent=0 // pred_fallthru
    _
  // Predicated region
  $region10: #{isicnet_forward.1} parent=0 // pred_check
    _
  $region11: #{isicnet_forward.1} parent=0 // pred_check_branch
    %15 = sbr.rel (0) target = $region13
  $region12: #{isicnet_forward.1} parent=0 // pred_region
    _
  $region13: #{isicnet_forward.1} parent=0 // pred_fallthru
    _
  // Predicated region
  $region14: #{isicnet_forward.1} parent=0 // pred_check
    _
  $region15: #{isicnet_forward.1} parent=0 // pred_check_branch
    %17 = sbr.rel (0) target = $region17
  $region16: #{isicnet_forward.1} parent=0 // pred_region
    _
  $region17: #{isicnet_forward.1} parent=0 // pred_fallthru
    _
  // Predicated region
  $region18: #{isicnet_forward.1} parent=0 // pred_check
    _
  $region19: #{isicnet_forward.1} parent=0 // pred_check_branch
    %19 = sbr.rel (0) target = $region21
  $region20: #{isicnet_forward.1} parent=0 // pred_region
    _
  $region21: #{isicnet_forward.1} parent=0 // pred_fallthru
    _
  %v21 = vld [vmem:[%s0] sm:$0x7]
  %v22 = vld [vmem:[%s0 + $0x4] sm:$0x7]
  %v23 = vld [vmem:[%s0 + $0x8] sm:$0x7]
  %v24 = vld [vmem:[%s0 + $0xc] sm:$0x7]
  %v25 = vld [vmem:[%s0 + $0x10] sm:$0x7]
  %v26 = vld [vmem:[%s0 + $0x14] sm:$0x7]
  %v27 = vld [vmem:[%s0 + $0x18] sm:$0x7]
  %v28 = vld [vmem:[%s0 + $0x1c] sm:$0x7]
  %v29 = vld [vmem:[%s0 + $0x20] sm:$0x7]
  %v30 = vld [vmem:[%s0 + $0x24] sm:$0x7]
  %v40 = vunpack.c.l.s4 1983009808
  %v41 = vunpack.c.0.s8 %v40
  %v42 = vlaneseq
  %v43 = vshrl.u32 %v42, 7
  %v44 = vsub.s32 %v41, %v43
  %v45 = vrot.slane %v21, %v44
  %v46 = vcombine.high %v45, %v45
  %v48 = vunpack.c.l.s4 1983009808
  %v49 = vunpack.c.0.s8 %v48
  %v50 = vlaneseq
  %v51 = vshrl.u32 %v50, 7
  %v52 = vsub.s32 %v49, %v51
  %v53 = vrot.slane %v22, %v52
  %v54 = vcombine.high %v53, %v53
  %v56 = vunpack.c.l.s4 1983009808
  %v57 = vunpack.c.0.s8 %v56
  %v58 = vlaneseq
  %v59 = vshrl.u32 %v58, 7
  %v60 = vsub.s32 %v57, %v59
  %v61 = vrot.slane %v23, %v60
  %v62 = vcombine.high %v61, %v61
  %v64 = vunpack.c.l.s4 1983009808
  %v65 = vunpack.c.0.s8 %v64
  %v66 = vlaneseq
  %v67 = vshrl.u32 %v66, 7
  %v68 = vsub.s32 %v65, %v67
  %v69 = vrot.slane %v24, %v68
  %v70 = vcombine.high %v69, %v69
  %v72 = vunpack.c.l.s4 1983009808
  %v73 = vunpack.c.0.s8 %v72
  %v74 = vlaneseq
  %v75 = vshrl.u32 %v74, 7
  %v76 = vsub.s32 %v73, %v75
  %v77 = vrot.slane %v26, %v76
  %v78 = vcombine.high %v77, %v77
  %v80 = vunpack.c.l.s4 1983009808
  %v81 = vunpack.c.0.s8 %v80
  %v82 = vlaneseq
  %v83 = vshrl.u32 %v82, 7
  %v84 = vsub.s32 %v81, %v83
  %v85 = vrot.slane %v27, %v84
  %v86 = vcombine.high %v85, %v85
  %v88 = vunpack.c.l.s4 1983009808
  %v89 = vunpack.c.0.s8 %v88
  %v90 = vlaneseq
  %v91 = vshrl.u32 %v90, 7
  %v92 = vsub.s32 %v89, %v91
  %v93 = vrot.slane %v28, %v92
  %v94 = vcombine.high %v93, %v93
  %v96 = vunpack.c.l.s4 1983009808
  %v97 = vunpack.c.0.s8 %v96
  %v98 = vlaneseq
  %v99 = vshrl.u32 %v98, 7
  %v100 = vsub.s32 %v97, %v99
  %v101 = vrot.slane %v29, %v100
  %v102 = vcombine.high %v101, %v101
  %vm103 = vsmask.f32 1280
  %vm104 = vsmask.f32 3336
  %vm105 = vmor %vm103, %vm104
  %vm106 = vsmask.f32 5392
  %vm107 = vmor %vm105, %vm106
  %vm108 = vsmask.f32 7448
  %vm109 = vmor %vm107, %vm108
  %v111 = vshrl.u32 %v45, 16
  %v113 = vrot.slane %v111, 6
  %v114 = vshll.u32 %v45, 16
  %v116 = vrot.slane %v114, 7
  %v117 = vor.u32 %v113, %v116
  %v118 = vrot.slane %v117, 2
  %v120 = vshll.u32 %v46, 16
  %v122 = vrot.slane %v120, 7
  %v123 = vsel %vm109, %v118, %v122
  %v125 = vshrl.u32 %v53, 16
  %v127 = vrot.slane %v125, 6
  %v128 = vshll.u32 %v53, 16
  %v130 = vrot.slane %v128, 7
  %v131 = vor.u32 %v127, %v130
  %v132 = vrot.slane %v131, 2
  %v134 = vshll.u32 %v54, 16
  %v136 = vrot.slane %v134, 7
  %v137 = vsel %vm109, %v132, %v136
  %v139 = vshrl.u32 %v61, 16
  %v141 = vrot.slane %v139, 6
  %v142 = vshll.u32 %v61, 16
  %v144 = vrot.slane %v142, 7
  %v145 = vor.u32 %v141, %v144
  %v146 = vrot.slane %v145, 2
  %v148 = vshll.u32 %v62, 16
  %v150 = vrot.slane %v148, 7
  %v151 = vsel %vm109, %v146, %v150
  %v153 = vshrl.u32 %v69, 16
  %v155 = vrot.slane %v153, 6
  %v156 = vshll.u32 %v69, 16
  %v158 = vrot.slane %v156, 7
  %v159 = vor.u32 %v155, %v158
  %v160 = vrot.slane %v159, 2
  %v162 = vshll.u32 %v70, 16
  %v164 = vrot.slane %v162, 7
  %v165 = vsel %vm109, %v160, %v164
  %v167 = vshrl.u32 %v77, 16
  %v169 = vrot.slane %v167, 6
  %v170 = vshll.u32 %v77, 16
  %v172 = vrot.slane %v170, 7
  %v173 = vor.u32 %v169, %v172
  %v174 = vrot.slane %v173, 2
  %v176 = vshll.u32 %v78, 16
  %v178 = vrot.slane %v176, 7
  %v179 = vsel %vm109, %v174, %v178
  %v181 = vshrl.u32 %v85, 16
  %v183 = vrot.slane %v181, 6
  %v184 = vshll.u32 %v85, 16
  %v186 = vrot.slane %v184, 7
  %v187 = vor.u32 %v183, %v186
  %v188 = vrot.slane %v187, 2
  %v190 = vshll.u32 %v86, 16
  %v192 = vrot.slane %v190, 7
  %v193 = vsel %vm109, %v188, %v192
  %v195 = vshrl.u32 %v93, 16
  %v197 = vrot.slane %v195, 6
  %v198 = vshll.u32 %v93, 16
  %v200 = vrot.slane %v198, 7
  %v201 = vor.u32 %v197, %v200
  %v202 = vrot.slane %v201, 2
  %v204 = vshll.u32 %v94, 16
  %v206 = vrot.slane %v204, 7
  %v207 = vsel %vm109, %v202, %v206
  %v209 = vshrl.u32 %v101, 16
  %v211 = vrot.slane %v209, 6
  %v212 = vshll.u32 %v101, 16
  %v214 = vrot.slane %v212, 7
  %v215 = vor.u32 %v211, %v214
  %v216 = vrot.slane %v215, 2
  %v218 = vshll.u32 %v102, 16
  %v220 = vrot.slane %v218, 7
  %v221 = vsel %vm109, %v216, %v220
  %v225 = vunpack.c.l.s4 1983009808
  %v226 = vunpack.c.0.s8 %v225
  %v227 = vlaneseq
  %v228 = vshrl.u32 %v227, 7
  %v229 = vsub.s32 %v226, %v228
  %v230 = vrot.slane %v25, %v229
  %v231 = vcombine.high %v230, %v230
  %v233 = vunpack.c.l.s4 1983009808
  %v234 = vunpack.c.0.s8 %v233
  %v235 = vlaneseq
  %v236 = vshrl.u32 %v235, 7
  %v237 = vsub.s32 %v234, %v236
  %v238 = vrot.slane %v30, %v237
  %v239 = vcombine.high %v238, %v238
  %v241 = vshrl.u32 %v230, 16
  %v243 = vrot.slane %v241, 6
  %v244 = vshll.u32 %v230, 16
  %v246 = vrot.slane %v244, 7
  %v247 = vor.u32 %v243, %v246
  %v248 = vrot.slane %v247, 2
  %v250 = vshll.u32 %v231, 16
  %v252 = vrot.slane %v250, 7
  %v253 = vsel %vm109, %v248, %v252
  %v255 = vshrl.u32 %v238, 16
  %v257 = vrot.slane %v255, 6
  %v258 = vshll.u32 %v238, 16
  %v260 = vrot.slane %v258, 7
  %v261 = vor.u32 %v257, %v260
  %v262 = vrot.slane %v261, 2
  %v264 = vshll.u32 %v239, 16
  %v266 = vrot.slane %v264, 7
  %v267 = vsel %vm109, %v262, %v266
  %v268 = vcombine.low %v21, %v22
  %v269 = vcombine.low %v23, %v24
  %v271 = vunpack.c.l.s4 1983009808
  %v272 = vunpack.c.0.s8 %v271
  %v273 = vlaneseq
  %v274 = vshrl.u32 %v273, 7
  %v275 = vsub.s32 %v272, %v274
  %v276 = vrot.slane %v268, %v275
  %v278 = vunpack.c.l.s4 1983009808
  %v279 = vunpack.c.0.s8 %v278
  %v280 = vlaneseq
  %v281 = vshrl.u32 %v280, 7
  %v282 = vsub.s32 %v279, %v281
  %v283 = vrot.slane %v269, %v282
  %v284 = vcombine.low %v276, %v283
  %v285 = vcombine.low %v26, %v27
  %v286 = vcombine.low %v28, %v29
  %v288 = vunpack.c.l.s4 1983009808
  %v289 = vunpack.c.0.s8 %v288
  %v290 = vlaneseq
  %v291 = vshrl.u32 %v290, 7
  %v292 = vsub.s32 %v289, %v291
  %v293 = vrot.slane %v285, %v292
  %v295 = vunpack.c.l.s4 1983009808
  %v296 = vunpack.c.0.s8 %v295
  %v297 = vlaneseq
  %v298 = vshrl.u32 %v297, 7
  %v299 = vsub.s32 %v296, %v298
  %v300 = vrot.slane %v286, %v299
  %v301 = vcombine.low %v293, %v300
  %v302 = vcombine.low %v123, %v137
  %v303 = vcombine.low %v151, %v165
  %v305 = vunpack.c.l.s4 1983009808
  %v306 = vunpack.c.0.s8 %v305
  %v307 = vlaneseq
  %v308 = vshrl.u32 %v307, 7
  %v309 = vsub.s32 %v306, %v308
  %v310 = vrot.slane %v302, %v309
  %v312 = vunpack.c.l.s4 1983009808
  %v313 = vunpack.c.0.s8 %v312
  %v314 = vlaneseq
  %v315 = vshrl.u32 %v314, 7
  %v316 = vsub.s32 %v313, %v315
  %v317 = vrot.slane %v303, %v316
  %v318 = vcombine.low %v310, %v317
  %v319 = vcombine.low %v179, %v193
  %v320 = vcombine.low %v207, %v221
  %v322 = vunpack.c.l.s4 1983009808
  %v323 = vunpack.c.0.s8 %v322
  %v324 = vlaneseq
  %v325 = vshrl.u32 %v324, 7
  %v326 = vsub.s32 %v323, %v325
  %v327 = vrot.slane %v319, %v326
  %v329 = vunpack.c.l.s4 1983009808
  %v330 = vunpack.c.0.s8 %v329
  %v331 = vlaneseq
  %v332 = vshrl.u32 %v331, 7
  %v333 = vsub.s32 %v330, %v332
  %v334 = vrot.slane %v320, %v333
  %v335 = vcombine.low %v327, %v334
  %336 = vrot.lane.b32.xlu0 %v318, 64
  %v337 = vpop.permute.xlu0 %336
  %338 = vrot.lane.b32.xlu0 %v335, 64
  %v339 = vpop.permute.xlu0 %338
  %v340 = vcombine.low %v22, %v23
  %v341 = vcombine.low %v24, %v25
  %v343 = vunpack.c.l.s4 1983009808
  %v344 = vunpack.c.0.s8 %v343
  %v345 = vlaneseq
  %v346 = vshrl.u32 %v345, 7
  %v347 = vsub.s32 %v344, %v346
  %v348 = vrot.slane %v340, %v347
  %v350 = vunpack.c.l.s4 1983009808
  %v351 = vunpack.c.0.s8 %v350
  %v352 = vlaneseq
  %v353 = vshrl.u32 %v352, 7
  %v354 = vsub.s32 %v351, %v353
  %v355 = vrot.slane %v341, %v354
  %v356 = vcombine.low %v348, %v355
  %v357 = vcombine.low %v27, %v28
  %v358 = vcombine.low %v29, %v30
  %v360 = vunpack.c.l.s4 1983009808
  %v361 = vunpack.c.0.s8 %v360
  %v362 = vlaneseq
  %v363 = vshrl.u32 %v362, 7
  %v364 = vsub.s32 %v361, %v363
  %v365 = vrot.slane %v357, %v364
  %v367 = vunpack.c.l.s4 1983009808
  %v368 = vunpack.c.0.s8 %v367
  %v369 = vlaneseq
  %v370 = vshrl.u32 %v369, 7
  %v371 = vsub.s32 %v368, %v370
  %v372 = vrot.slane %v358, %v371
  %v373 = vcombine.low %v365, %v372
  %v374 = vcombine.low %v137, %v151
  %v375 = vcombine.low %v165, %v253
  %v377 = vunpack.c.l.s4 1983009808
  %v378 = vunpack.c.0.s8 %v377
  %v379 = vlaneseq
  %v380 = vshrl.u32 %v379, 7
  %v381 = vsub.s32 %v378, %v380
  %v382 = vrot.slane %v374, %v381
  %v384 = vunpack.c.l.s4 1983009808
  %v385 = vunpack.c.0.s8 %v384
  %v386 = vlaneseq
  %v387 = vshrl.u32 %v386, 7
  %v388 = vsub.s32 %v385, %v387
  %v389 = vrot.slane %v375, %v388
  %v390 = vcombine.low %v382, %v389
  %v391 = vcombine.low %v193, %v207
  %v392 = vcombine.low %v221, %v267
  %v394 = vunpack.c.l.s4 1983009808
  %v395 = vunpack.c.0.s8 %v394
  %v396 = vlaneseq
  %v397 = vshrl.u32 %v396, 7
  %v398 = vsub.s32 %v395, %v397
  %v399 = vrot.slane %v391, %v398
  %v401 = vunpack.c.l.s4 1983009808
  %v402 = vunpack.c.0.s8 %v401
  %v403 = vlaneseq
  %v404 = vshrl.u32 %v403, 7
  %v405 = vsub.s32 %v402, %v404
  %v406 = vrot.slane %v392, %v405
  %v407 = vcombine.low %v399, %v406
  %408 = vrot.lane.b32.xlu0 %v390, 64
  %v409 = vpop.permute.xlu0 %408
  %410 = vrot.lane.b32.xlu0 %v407, 64
  %v411 = vpop.permute.xlu0 %410
  %vm412 = vcmask 523264
  %v415 = vsel %vm412, %v284, %v337
  %v419 = vsel %vm412, %v301, %v339
  %v423 = vsel %vm412, %v356, %v409
  %v427 = vsel %vm412, %v373, %v411
  %v429 = vld [vmem:[%s1] sm:$0xf]
  %v430 = vld [vmem:[%s1 + $0x4] sm:$0xf]
  %v431 = vld [vmem:[%s1 + $0x8] sm:$0xf]
  %v432 = vld [vmem:[%s1 + $0xc] sm:$0xf]
  %v433 = vld [vmem:[%s1 + $0x10] sm:$0xf]
  %v434 = vld [vmem:[%s1 + $0x14] sm:$0xf]
  %v435 = vld [vmem:[%s1 + $0x18] sm:$0xf]
  %v436 = vld [vmem:[%s1 + $0x1c] sm:$0xf]
  %v437 = vld [vmem:[%s1 + $0x20] sm:$0xf]
  %v438 = vld [vmem:[%s1 + $0x24] sm:$0xf]
  %v439 = vld [vmem:[%s1 + $0x28] sm:$0xf]
  %v440 = vld [vmem:[%s1 + $0x2c] sm:$0xf]
  %v441 = vld [vmem:[%s1 + $0x30] sm:$0xf]
  %v442 = vld [vmem:[%s1 + $0x34] sm:$0xf]
  %v443 = vld [vmem:[%s1 + $0x38] sm:$0xf]
  %v444 = vld [vmem:[%s1 + $0x3c] sm:$0xf]
  %v445 = vld [vmem:[%s1 + $0x40] sm:$0xf]
  %v446 = vld [vmem:[%s1 + $0x44] sm:$0xf]
  %v447 = vld [vmem:[%s1 + $0x48] sm:$0xf]
  %v448 = vld [vmem:[%s1 + $0x4c] sm:$0xf]
  %v449 = vld [vmem:[%s1 + $0x50] sm:$0xf]
  %v450 = vld [vmem:[%s1 + $0x54] sm:$0xf]
  %v451 = vld [vmem:[%s1 + $0x58] sm:$0xf]
  %v452 = vld [vmem:[%s1 + $0x5c] sm:$0xf]
  %v453 = vld [vmem:[%s1 + $0x60] sm:$0xf]
  %v454 = vld [vmem:[%s1 + $0x64] sm:$0xf]
  %v455 = vld [vmem:[%s1 + $0x68] sm:$0xf]
  %v456 = vld [vmem:[%s1 + $0x6c] sm:$0xf]
  %v457 = vld [vmem:[%s1 + $0x70] sm:$0xf]
  %v458 = vld [vmem:[%s1 + $0x74] sm:$0xf]
  %v459 = vld [vmem:[%s1 + $0x78] sm:$0xf]
  %v460 = vld [vmem:[%s1 + $0x7c] sm:$0xf]
  %v461 = vld [vmem:[%s2] sm:$0x1]
  %v463 = vlaneseq
  %v464 = vshrl.u32 %v463, 7
  %v465 = vsub.s32 0, %v464
  %v466 = vrot.slane %v461, %v465
  %v500 = vunpack.c.l.b16 %v429
  %v501 = vunpack.c.l.b16 %v430
  %v502 = vunpack.c.l.b16 %v431
  %v503 = vunpack.c.l.b16 %v432
  %v504 = vunpack.c.l.b16 %v433
  %v505 = vunpack.c.l.b16 %v434
  %v506 = vunpack.c.l.b16 %v435
  %v507 = vunpack.c.l.b16 %v436
  %v508 = vunpack.c.l.b16 %v437
  %v509 = vunpack.c.l.b16 %v438
  %v510 = vunpack.c.l.b16 %v439
  %v511 = vunpack.c.l.b16 %v440
  %v512 = vunpack.c.l.b16 %v441
  %v513 = vunpack.c.l.b16 %v442
  %v514 = vunpack.c.l.b16 %v443
  %v515 = vunpack.c.l.b16 %v444
  %v516 = vunpack.c.l.b16 %v445
  %v517 = vunpack.c.l.b16 %v446
  %v518 = vunpack.c.l.b16 %v447
  %v519 = vunpack.c.l.b16 %v448
  %v520 = vunpack.c.l.b16 %v449
  %v521 = vunpack.c.l.b16 %v450
  %v522 = vunpack.c.l.b16 %v451
  %v523 = vunpack.c.l.b16 %v452
  %v524 = vunpack.c.l.b16 %v453
  %v525 = vunpack.c.l.b16 %v454
  %v526 = vunpack.c.l.b16 %v455
  %v527 = vunpack.c.l.b16 %v456
  %v528 = vunpack.c.l.b16 %v457
  %v529 = vunpack.c.l.b16 %v458
  %v530 = vunpack.c.l.b16 %v459
  %v531 = vunpack.c.l.b16 %v460
  %v532 = vpack.c.b16 %v501, %v500
  %v533 = vpack.c.b16 %v503, %v502
  %v534 = vpack.c.b16 %v505, %v504
  %v535 = vpack.c.b16 %v507, %v506
  %v536 = vpack.c.b16 %v509, %v508
  %v537 = vpack.c.b16 %v511, %v510
  %v538 = vpack.c.b16 %v513, %v512
  %v539 = vpack.c.b16 %v515, %v514
  %v540 = vpack.c.b16 %v517, %v516
  %v541 = vpack.c.b16 %v519, %v518
  %v542 = vpack.c.b16 %v521, %v520
  %v543 = vpack.c.b16 %v523, %v522
  %v544 = vpack.c.b16 %v525, %v524
  %v545 = vpack.c.b16 %v527, %v526
  %v546 = vpack.c.b16 %v529, %v528
  %v547 = vpack.c.b16 %v531, %v530
  %564 = vmatprep.subr.bf16.mxu0 0
  %565 = vmatpush1.bf16.msra.mxu0 %v532
  %566 = vmatprep.subr.bf16.mxu0 0
  %567 = vmatpush1.bf16.msra.mxu0 %v533
  %568 = vmatprep.subr.bf16.mxu0 0
  %569 = vmatpush1.bf16.msra.mxu0 %v534
  %570 = vmatprep.subr.bf16.mxu0 0
  %571 = vmatpush1.bf16.msra.mxu0 %v535
  %572 = vmatprep.subr.bf16.mxu0 0
  %573 = vmatpush1.bf16.msra.mxu0 %v536
  %574 = vmatprep.subr.bf16.mxu0 0
  %575 = vmatpush1.bf16.msra.mxu0 %v537
  %576 = vmatprep.subr.bf16.mxu0 0
  %577 = vmatpush1.bf16.msra.mxu0 %v538
  %578 = vmatprep.subr.bf16.mxu0 0
  %579 = vmatpush1.bf16.msra.mxu0 %v539
  %580 = vmatprep.subr.bf16.mxu0 0
  %581 = vmatpush1.bf16.msra.mxu0 %v540
  %582 = vmatprep.subr.bf16.mxu0 0
  %583 = vmatpush1.bf16.msra.mxu0 %v541
  %584 = vmatprep.subr.bf16.mxu0 0
  %585 = vmatpush1.bf16.msra.mxu0 %v542
  %586 = vmatprep.subr.bf16.mxu0 0
  %587 = vmatpush1.bf16.msra.mxu0 %v543
  %588 = vmatprep.subr.bf16.mxu0 0
  %589 = vmatpush1.bf16.msra.mxu0 %v544
  %590 = vmatprep.subr.bf16.mxu0 0
  %591 = vmatpush1.bf16.msra.mxu0 %v545
  %592 = vmatprep.subr.bf16.mxu0 0
  %593 = vmatpush1.bf16.msra.mxu0 %v546
  %594 = vmatprep.subr.bf16.mxu0 0
  %595 = vmatpush1.bf16.msra.mxu0 %v547
  %596 = vmatprep.mubr.bf16.mxu0 %v423
  %597 = vmatmul.mubr.bf16.gmra.mrb[0].mxu0 %v415
  %v598 = vpop.f32.mrb[0].mxu0
  %v599 = vadd.f32 %v466, %v598
  %v600 = vpop.f32.mrb[0].mxu0
  %v601 = vpop.f32.mrb[0].mxu0
  %v602 = vadd.f32 %v466, %v601
  %v603 = vpop.f32.mrb[0].mxu0
  %604 = vmatprep.mubr.bf16.mxu0 %v427
  %605 = vmatmul.mubr.bf16.gmra.mrb[0].mxu0 %v419
  %v606 = vpop.f32.mrb[0].mxu0
  %v607 = vadd.f32 %v466, %v606
  %v608 = vpop.f32.mrb[0].mxu0
  %v609 = vpop.f32.mrb[0].mxu0
  %v610 = vadd.f32 %v466, %v609
  %v611 = vpop.f32.mrb[0].mxu0
  %612 = vdwg.mxu0
  %v613 = vmax.f32 %v599, 0.0
  %v614 = vmax.f32 %v602, 0.0
  %v615 = vmax.f32 %v607, 0.0
  %v616 = vmax.f32 %v610, 0.0
  %v617 = vsel %vm412, %v613, 0.0
  %v618 = vsel %vm412, %v614, 0.0
  %v619 = vadd.f32 %v617, %v618
  %v620 = vrot.slane %v619, 4
  %v621 = vadd.f32 %v619, %v620
  %v622 = vrot.slane %v621, 2
  %v623 = vadd.f32 %v621, %v622
  %v624 = vrot.slane %v623, 1
  %v625 = vadd.f32 %v623, %v624
  %v626 = vsel %vm412, %v615, 0.0
  %v627 = vsel %vm412, %v616, 0.0
  %v628 = vadd.f32 %v626, %v627
  %v629 = vrot.slane %v628, 4
  %v630 = vadd.f32 %v628, %v629
  %v631 = vrot.slane %v630, 2
  %v632 = vadd.f32 %v630, %v631
  %v633 = vrot.slane %v632, 1
  %v634 = vadd.f32 %v632, %v633
  %v635 = vrcp.pop 16.0
  %v636 = vmul.f32 %v625, %v635
  %v637 = vmul.f32 %v634, %v635
  %v638 = vpack.c.bf16 %v636, %v636
  %v639 = vpack.c.bf16 %v637, %v637
  %v640 = vld [vmem:[%s3] sm:$0xf]
  %v641 = vld [vmem:[%s3 + $0x4] sm:$0xf]
  %v642 = vld [vmem:[%s3 + $0x8] sm:$0xf]
  %v643 = vld [vmem:[%s3 + $0xc] sm:$0xf]
  %v644 = vld [vmem:[%s3 + $0x10] sm:$0xf]
  %v645 = vld [vmem:[%s3 + $0x14] sm:$0xf]
  %v646 = vld [vmem:[%s3 + $0x18] sm:$0xf]
  %v647 = vld [vmem:[%s3 + $0x1c] sm:$0xf]
  %v648 = vld [vmem:[%s4] sm:$0x1]
  %v650 = vlaneseq
  %v651 = vshrl.u32 %v650, 7
  %v652 = vsub.s32 0, %v651
  %v653 = vrot.slane %v648, %v652
  %v657 = vunpack.c.l.b16 %v638
  %v658 = vunpack.c.l.b16 %v639
  %vm659 = vcmask 1041409
  %v660 = vsel %vm659, %v658, %v657
  %v661 = vpack.c.b16 %v660, %v660
  %v670 = vunpack.c.l.b16 %v640
  %v671 = vunpack.c.l.b16 %v641
  %v672 = vunpack.c.l.b16 %v642
  %v673 = vunpack.c.l.b16 %v643
  %v674 = vunpack.c.l.b16 %v644
  %v675 = vunpack.c.l.b16 %v645
  %v676 = vunpack.c.l.b16 %v646
  %v677 = vunpack.c.l.b16 %v647
  %v678 = vpack.c.b16 %v671, %v670
  %v679 = vpack.c.b16 %v673, %v672
  %v680 = vpack.c.b16 %v675, %v674
  %v681 = vpack.c.b16 %v677, %v676
  %v687 = vsel %vm412, %v661, 0
  %689 = vmatprep.subr.bf16.mxu0 0
  %690 = vmatpush1.bf16.msra.mxu0 %v678
  %691 = vmatprep.subr.bf16.mxu0 0
  %692 = vmatpush1.bf16.msra.mxu0 %v679
  %693 = vmatprep.subr.bf16.mxu0 0
  %694 = vmatpush1.bf16.msra.mxu0 %v680
  %695 = vmatprep.subr.bf16.mxu0 0
  %696 = vmatpush1.bf16.msra.mxu0 %v681
  %697 = vmatprep.subr.bf16.mxu0 0
  %698 = vmatpush1.bf16.msra.mxu0 0
  %699 = vmatprep.subr.bf16.mxu0 0
  %700 = vmatpush1.bf16.msra.mxu0 0
  %701 = vmatprep.subr.bf16.mxu0 0
  %702 = vmatpush1.bf16.msra.mxu0 0
  %703 = vmatprep.subr.bf16.mxu0 0
  %704 = vmatpush1.bf16.msra.mxu0 0
  %705 = vmatprep.subr.bf16.mxu0 0
  %706 = vmatpush1.bf16.msra.mxu0 0
  %707 = vmatprep.subr.bf16.mxu0 0
  %708 = vmatpush1.bf16.msra.mxu0 0
  %709 = vmatprep.subr.bf16.mxu0 0
  %710 = vmatpush1.bf16.msra.mxu0 0
  %711 = vmatprep.subr.bf16.mxu0 0
  %712 = vmatpush1.bf16.msra.mxu0 0
  %713 = vmatprep.subr.bf16.mxu0 0
  %714 = vmatpush1.bf16.msra.mxu0 0
  %715 = vmatprep.subr.bf16.mxu0 0
  %716 = vmatpush1.bf16.msra.mxu0 0
  %717 = vmatprep.subr.bf16.mxu0 0
  %718 = vmatpush1.bf16.msra.mxu0 0
  %719 = vmatprep.subr.bf16.mxu0 0
  %720 = vmatpush1.bf16.msra.mxu0 0
  %721 = vmatprep.mubr.bf16.mxu0 0
  %722 = vmatmul.mubr.bf16.gmra.mrb[0].mxu0 %v687
  %v723 = vpop.f32.mrb[0].mxu0
  %v724 = vadd.f32 %v653, %v723
  %v725 = vpop.f32.mrb[0].mxu0
  %v726 = vpop.f32.mrb[0].mxu0
  %v727 = vpop.f32.mrb[0].mxu0
  %728 = vdwg.mxu0
  %v729 = vpack.c.bf16 %v724, %v724
  %730 = vst [vmem:[%s5] sm:$0x1] %v729
  // Predicated region
  $region22: #{isicnet_forward.1} parent=0 // pred_check
    _
  $region23: #{isicnet_forward.1} parent=0 // pred_check_branch
    %732 = sbr.rel (0) target = $region25
  $region24: #{isicnet_forward.1} parent=0 // pred_region
    _
  $region25: #{isicnet_forward.1} parent=0 // pred_fallthru
    _
  // Predicated region
  $region26: #{isicnet_forward.1} parent=0 // pred_check
    _
  $region27: #{isicnet_forward.1} parent=0 // pred_check_branch
    %734 = sbr.rel (0) target = $region29
  $region28: #{isicnet_forward.1} parent=0 // pred_region
    _
  $region29: #{isicnet_forward.1} parent=0 // pred_fallthru
    _

</llo_original>
